<compile_context>
chip_gen: v5e
topology: v5e:2x2
jax: 0.10.0
libtpu: 0.0.40
codegen_flags: <defaults>
</compile_context>

<pallas_src>
import functools

import jax
import jax.numpy as jnp
import numpy as np
from jax.experimental import pallas as pl
from jax.experimental.pallas import tpu as pltpu


def _round_up(x, m):
    return -(-x // m) * m


# --------------------------------------------------------------------------- #
# Kernel 1: lane-dense matmul + BN(eval) + ReLU (small Cin / strided convs;
# patches are built wrapper-side).
# --------------------------------------------------------------------------- #
def _matmul_bn_relu_kernel(p_ref, w_ref, scale_ref, shift_ref, o_ref):
    """p_ref: (1, TM, KKp); w_ref: (KKp, Coutp) resident VMEM;
    scale/shift: (1, Coutp) f32 resident VMEM; o_ref: (1, TM, Coutp)."""
    acc = jnp.dot(p_ref[0], w_ref[...], preferred_element_type=jnp.float32)
    y = acc * scale_ref[0] + shift_ref[0]          # folded bias + BN, in f32
    o_ref[0] = jnp.maximum(y, 0.0).astype(o_ref.dtype)


# --------------------------------------------------------------------------- #
# Kernel 2: per-tap accumulating matmuls (large Cin, stride 1). No im2col
# scratch, no reshape relayout; one f32 accumulator carried across KH*KW taps.
# --------------------------------------------------------------------------- #
def _taps_bn_relu_kernel(x_ref, w_ref, scale_ref, shift_ref, o_ref, *,
                         kh, kw, th, wout, cin):
    """x_ref: (1, Hp, Wp, Cin) resident per batch element;
    w_ref: (KH*KW, Cin, Coutp) resident VMEM; o_ref: (1, TH*Wout, Coutp)."""
    h = pl.program_id(1)
    row0 = h * th                                   # stride == 1 on this path
    if th % 8 == 0:                                 # sublane alignment hint
        row0 = pl.multiple_of(row0, 8)
    rows = th + kh - 1
    x = x_ref[0, pl.ds(row0, rows), :, :]           # (rows, Wp, Cin)

    coutp = o_ref.shape[-1]
    acc = jnp.zeros((th * wout, coutp), jnp.float32)
    for i in range(kh):
        for j in range(kw):
            tap = jax.lax.slice(x, (i, j, 0), (i + th, j + wout, cin))
            acc = acc + jnp.dot(tap.reshape(th * wout, cin),
                                w_ref[i * kw + j],
                                preferred_element_type=jnp.float32)

    y = acc * scale_ref[0] + shift_ref[0]
    o_ref[0] = jnp.maximum(y, 0.0).astype(o_ref.dtype)


# --------------------------------------------------------------------------- #
# Wrapper paths
# --------------------------------------------------------------------------- #
_VMEM_LIMIT = 40 * 1024 * 1024  # fits v7x's 64 MiB VMEM with headroom


def _im2col_path(x_nhwc, conv_w, scale_p, shift_p, *, N, Cin, Cout_p, KH, KW,
                 Hout, Wout, stride, padding, compute_dtype, out_dtype,
                 m_target):
    # Wrapper-side patch extraction -> the kernel only sees lane-dense blocks.
    x = jnp.pad(x_nhwc, ((0, 0), (padding, padding), (padding, padding),
                         (0, 0)))
    taps = []
    for i in range(KH):
        for j in range(KW):
            taps.append(jax.lax.slice(
                x, (0, i, j, 0),
                (N, i + (Hout - 1) * stride + 1,
                 j + (Wout - 1) * stride + 1, Cin),
                (1, stride, stride, 1)))            # (N, Hout, Wout, Cin)
    KK = KH * KW * Cin
    patches = jnp.concatenate(taps, axis=-1).reshape(N, Hout * Wout, KK)

    KK_p = _round_up(KK, 128)                       # lane-dense K
    P = Hout * Wout
    TM = _round_up(min(m_target, P), 8)             # M ~ 256 per grid step
    P_p = _round_up(P, TM)                          # pad so blocks never OOB
    patches = jnp.pad(patches, ((0, 0), (0, P_p - P), (0, KK_p - KK)))

    w = jnp.transpose(conv_w, (2, 3, 1, 0)).reshape(KK, -1)      # (KK, Cout)
    w = jnp.pad(w, ((0, KK_p - KK), (0, Cout_p - w.shape[1])))
    w = w.astype(compute_dtype)

    out = pl.pallas_call(
        _matmul_bn_relu_kernel,
        out_shape=jax.ShapeDtypeStruct((N, P_p, Cout_p), out_dtype),
        grid_spec=pltpu.PrefetchScalarGridSpec(
            num_scalar_prefetch=0,
            grid=(N, P_p // TM),
            in_specs=[
                pl.BlockSpec((1, TM, KK_p), lambda n, m: (n, m, 0)),
                # Grid-invariant operands: unblocked VMEM residents
                # (single copy, no double-buffering).
                pl.BlockSpec(memory_space=pltpu.MemorySpace.VMEM),
                pl.BlockSpec(memory_space=pltpu.MemorySpace.VMEM),
                pl.BlockSpec(memory_space=pltpu.MemorySpace.VMEM),
            ],
            out_specs=pl.BlockSpec((1, TM, Cout_p), lambda n, m: (n, m, 0)),
        ),
        compiler_params=pltpu.CompilerParams(
            dimension_semantics=("parallel", "parallel"),
            vmem_limit_bytes=_VMEM_LIMIT),
    )(patches, w, scale_p, shift_p)
    return out


def _taps_path(x_nhwc, conv_w, scale_p, shift_p, *, N, Cin, Cout_p, KH, KW,
               Hout, Wout, padding, compute_dtype, out_dtype, m_target):
    # stride == 1 only (large-Cin interior layers).
    TH = max(1, min(Hout, m_target // max(1, Wout)))
    while TH < Hout and (TH * Wout) % 8 != 0:
        TH += 1
    if (TH * Wout) % 8 != 0:
        TH = Hout                                   # single tile (full dim ok)
    HT = -(-Hout // TH)
    extra = HT * TH - Hout                          # bottom pad => no OOB tiles
    x = jnp.pad(x_nhwc, ((0, 0), (padding, padding + extra),
                         (padding, padding), (0, 0)))
    Hp, Wp = x.shape[1], x.shape[2]

    w = jnp.transpose(conv_w, (2, 3, 1, 0)).reshape(KH * KW, Cin, -1)
    w = jnp.pad(w, ((0, 0), (0, 0), (0, Cout_p - w.shape[-1])))
    w = w.astype(compute_dtype)

    kernel = functools.partial(_taps_bn_relu_kernel, kh=KH, kw=KW, th=TH,
                               wout=Wout, cin=Cin)
    out = pl.pallas_call(
        kernel,
        out_shape=jax.ShapeDtypeStruct((N, HT * TH * Wout, Cout_p), out_dtype),
        grid_spec=pltpu.PrefetchScalarGridSpec(
            num_scalar_prefetch=0,
            grid=(N, HT),
            in_specs=[
                # Full padded image per batch element; block index only
                # changes with n, so it stays resident across the h steps.
                pl.BlockSpec((1, Hp, Wp, Cin), lambda n, h: (n, 0, 0, 0)),
                pl.BlockSpec(memory_space=pltpu.MemorySpace.VMEM),
                pl.BlockSpec(memory_space=pltpu.MemorySpace.VMEM),
                pl.BlockSpec(memory_space=pltpu.MemorySpace.VMEM),
            ],
            out_specs=pl.BlockSpec((1, TH * Wout, Cout_p),
                                   lambda n, h: (n, h, 0)),
        ),
        compiler_params=pltpu.CompilerParams(
            # h "arbitrary": megacore shards over N so the resident image is
            # not DMA'd once per core.
            dimension_semantics=("parallel", "arbitrary"),
            vmem_limit_bytes=_VMEM_LIMIT),
    )(x, w, scale_p, shift_p)
    return out


def basic_conv2d(x_nchw, conv_w, conv_b, bn_gamma, bn_beta, bn_mean, bn_var,
                 *, stride, padding, eps=1e-3, compute_dtype=jnp.float32,
                 out_dtype=None, m_target=256):
    """Forward of BasicConv2d (Conv2d + eval-mode BatchNorm2d + ReLU), NCHW."""
    N, Cin, H, W = x_nchw.shape
    Cout, _, KH, KW = conv_w.shape
    Hout = (H + 2 * padding - KH) // stride + 1
    Wout = (W + 2 * padding - KW) // stride + 1
    if out_dtype is None:
        out_dtype = x_nchw.dtype
    Cout_p = _round_up(Cout, 128)                   # lane-dense output channels

    # Fold conv bias + eval-mode BN into per-channel scale/shift (kept f32).
    inv_std = 1.0 / jnp.sqrt(bn_var.astype(jnp.float32) + eps)
    scale = bn_gamma.astype(jnp.float32) * inv_std
    shift = ((conv_b.astype(jnp.float32) - bn_mean.astype(jnp.float32)) * scale
             + bn_beta.astype(jnp.float32))
    scale_p = jnp.pad(scale, (0, Cout_p - Cout)).reshape(1, Cout_p)
    shift_p = jnp.pad(shift, (0, Cout_p - Cout)).reshape(1, Cout_p)

    x = jnp.transpose(x_nchw, (0, 2, 3, 1)).astype(compute_dtype)    # NHWC

    if Cin >= 64 and stride == 1:
        out_flat = _taps_path(
            x, conv_w, scale_p, shift_p, N=N, Cin=Cin, Cout_p=Cout_p,
            KH=KH, KW=KW, Hout=Hout, Wout=Wout, padding=padding,
            compute_dtype=compute_dtype, out_dtype=out_dtype,
            m_target=m_target)
    else:
        out_flat = _im2col_path(
            x, conv_w, scale_p, shift_p, N=N, Cin=Cin, Cout_p=Cout_p,
            KH=KH, KW=KW, Hout=Hout, Wout=Wout, stride=stride,
            padding=padding, compute_dtype=compute_dtype, out_dtype=out_dtype,
            m_target=m_target)

    out = out_flat[:, :Hout * Wout, :Cout].reshape(N, Hout, Wout, Cout)
    return jnp.transpose(out, (0, 3, 1, 2))          # back to NCHW


# --------------------------------------------------------------------------- #
# Pure-JAX reference and tests
# --------------------------------------------------------------------------- #
def _reference(x_nchw, conv_w, conv_b, bn_gamma, bn_beta, bn_mean, bn_var,
               *, stride, padding, eps=1e-3):
    y = jax.lax.conv_general_dilated(
        x_nchw, conv_w,
        window_strides=(stride, stride),
        padding=[(padding, padding), (padding, padding)],
        dimension_numbers=("NCHW", "OIHW", "NCHW"))
    y = y + conv_b.reshape(1, -1, 1, 1)
    y = (y - bn_mean.reshape(1, -1, 1, 1)) / jnp.sqrt(
        bn_var.reshape(1, -1, 1, 1) + eps)
    y = y * bn_gamma.reshape(1, -1, 1, 1) + bn_beta.reshape(1, -1, 1, 1)
    return jnp.maximum(y, 0.0)


def _run_case(key, *, N, Cin, Cout, H, W, k, stride, padding, compute_dtype,
              out_dtype, m_target, rtol, atol):
    kx, kw_, kb, kg, kbe = jax.random.split(key, 5)
    x = jax.random.normal(kx, (N, Cin, H, W), jnp.float32)
    conv_w = 0.1 * jax.random.normal(kw_, (Cout, Cin, k, k), jnp.float32)
    conv_b = 0.1 * jax.random.normal(kb, (Cout,), jnp.float32)
    gamma = 1.0 + 0.1 * jax.random.normal(kg, (Cout,), jnp.float32)
    beta = 0.1 * jax.random.normal(kbe, (Cout,), jnp.float32)
    mean = jnp.zeros((Cout,), jnp.float32)   # PyTorch BN init (eval mode)
    var = jnp.ones((Cout,), jnp.float32)

    ref = _reference(x, conv_w, conv_b, gamma, beta, mean, var,
                     stride=stride, padding=padding)
    out = basic_conv2d(x, conv_w, conv_b, gamma, beta, mean, var,
                       stride=stride, padding=padding,
                       compute_dtype=compute_dtype, out_dtype=out_dtype,
                       m_target=m_target)
    out = jax.block_until_ready(out)
    np.testing.assert_allclose(np.asarray(out.astype(jnp.float32)),
                               np.asarray(ref), rtol=rtol, atol=atol)


if __name__ == "__main__":
    key = jax.random.PRNGKey(0)
    k1, k2, k3, k4 = jax.random.split(key, 4)

    # 1) Spec-sized case (Cin=4 -> wrapper im2col path), f32, tight tolerance.
    _run_case(k1, N=2, Cin=4, Cout=8, H=16, W=16, k=3, stride=1, padding=1,
              compute_dtype=jnp.float32, out_dtype=None, m_target=256,
              rtol=1e-5, atol=1e-5)

    # 2) Same shapes, bf16 compute + bf16 output stores (v6e/v7x path).
    _run_case(k2, N=2, Cin=4, Cout=8, H=16, W=16, k=3, stride=1, padding=1,
              compute_dtype=jnp.bfloat16, out_dtype=jnp.bfloat16, m_target=256,
              rtol=5e-2, atol=5e-2)

    # 3) Large-Cin per-tap path, non-divisible Hout (Hout=9, TH=8 -> 2 h tiles).
    _run_case(k3, N=2, Cin=128, Cout=32, H=9, W=9, k=3, stride=1, padding=1,
              compute_dtype=jnp.float32, out_dtype=None, m_target=64,
              rtol=5e-4, atol=5e-4)

    # 4) Strided conv (stride=2, pad=0) via the wrapper im2col path.
    _run_case(k4, N=2, Cin=3, Cout=16, H=15, W=15, k=3, stride=2, padding=0,
              compute_dtype=jnp.float32, out_dtype=None, m_target=256,
              rtol=1e-5, atol=1e-5)

    print("KERNEL_OK")
</pallas_src>

<mosaic_0001>
module attributes {stable_mosaic.version = 11 : i64} {
  func.func @_matmul_bn_relu_kernel(%arg0: i32, %arg1: i32, %arg2: memref<1x256x128xf32, #tpu.memory_space<vmem>>, %arg3: memref<128x128xf32, #tpu.memory_space<vmem>>, %arg4: memref<1x128xf32, #tpu.memory_space<vmem>>, %arg5: memref<1x128xf32, #tpu.memory_space<vmem>>, %arg6: memref<1x256x128xf32, #tpu.memory_space<vmem>>) attributes {dimension_semantics = [#tpu.dimension_semantics<parallel>, #tpu.dimension_semantics<parallel>], iteration_bounds = array<i64: 2, 1>, scalar_prefetch = 0 : i64, scratch_operands = 0 : i64, tpu.core_type = #tpu.core_type<tc>, window_params = [{transform_indices = @transform_0, window_bounds = array<i64: 1, 256, 128>}, {pipeline_mode = #tpu.pipeline_mode<synchronous>, transform_indices = @transform_1, window_bounds = array<i64: 128, 128>}, {pipeline_mode = #tpu.pipeline_mode<synchronous>, transform_indices = @transform_2, window_bounds = array<i64: 1, 128>}, {pipeline_mode = #tpu.pipeline_mode<synchronous>, transform_indices = @transform_3, window_bounds = array<i64: 1, 128>}, {transform_indices = @transform_4, window_bounds = array<i64: 1, 256, 128>}]} {
    %c0 = arith.constant 0 : index
    %c0_0 = arith.constant 0 : index
    %c0_1 = arith.constant 0 : index
    %0 = vector.load %arg2[%c0, %c0_0, %c0_1] : memref<1x256x128xf32, #tpu.memory_space<vmem>>, vector<1x256x128xf32>
    %1 = vector.shape_cast %0 : vector<1x256x128xf32> to vector<256x128xf32>
    %c0_2 = arith.constant 0 : index
    %c0_3 = arith.constant 0 : index
    %2 = vector.load %arg3[%c0_2, %c0_3] : memref<128x128xf32, #tpu.memory_space<vmem>>, vector<128x128xf32>
    %cst = arith.constant dense<0.000000e+00> : vector<256x128xf32>
    %3 = tpu.matmul %1, %2, %cst {dimension_numbers = #tpu.dot_dimension_numbers<[1], [0], [0], [1], [0, 0, 1, 1], [], []>} : vector<256x128xf32>, vector<128x128xf32>, vector<256x128xf32> -> vector<256x128xf32>
    %c0_4 = arith.constant 0 : index
    %c0_5 = arith.constant 0 : index
    %4 = vector.load %arg4[%c0_4, %c0_5] : memref<1x128xf32, #tpu.memory_space<vmem>>, vector<1x128xf32>
    %5 = vector.shape_cast %4 : vector<1x128xf32> to vector<128xf32>
    %6 = vector.shape_cast %5 : vector<128xf32> to vector<1x128xf32>
    %7 = vector.broadcast %6 : vector<1x128xf32> to vector<256x128xf32>
    %8 = arith.mulf %3, %7 : vector<256x128xf32>
    %c0_6 = arith.constant 0 : index
    %c0_7 = arith.constant 0 : index
    %9 = vector.load %arg5[%c0_6, %c0_7] : memref<1x128xf32, #tpu.memory_space<vmem>>, vector<1x128xf32>
    %10 = vector.shape_cast %9 : vector<1x128xf32> to vector<128xf32>
    %11 = vector.shape_cast %10 : vector<128xf32> to vector<1x128xf32>
    %12 = vector.broadcast %11 : vector<1x128xf32> to vector<256x128xf32>
    %13 = arith.addf %8, %12 : vector<256x128xf32>
    %cst_8 = arith.constant 0.000000e+00 : f32
    %14 = vector.broadcast %cst_8 : f32 to vector<256x128xf32>
    %15 = arith.maximumf %13, %14 : vector<256x128xf32>
    %c0_9 = arith.constant 0 : index
    %c0_10 = arith.constant 0 : index
    %c0_11 = arith.constant 0 : index
    %16 = vector.load %arg6[%c0_9, %c0_10, %c0_11] : memref<1x256x128xf32, #tpu.memory_space<vmem>>, vector<1x256x128xf32>
    %17 = vector.shape_cast %16 : vector<1x256x128xf32> to vector<256x128xf32>
    %18 = vector.shape_cast %15 : vector<256x128xf32> to vector<1x256x128xf32>
    tpu.vector_store %arg6[%c0_9, %c0_10, %c0_11], %18 {strides = array<i32>} : memref<1x256x128xf32, #tpu.memory_space<vmem>>, vector<1x256x128xf32>,
    return
  }
  func.func @transform_0(%arg0: i32, %arg1: i32) -> (i32, i32, i32) {
    %c0_i32 = arith.constant 0 : i32
    %c0_i32_0 = arith.constant 0 : i32
    return %arg0, %arg1, %c0_i32 : i32, i32, i32
  }
  func.func @transform_1(%arg0: i32, %arg1: i32) -> (i32, i32) {
    %c0_i32 = arith.constant 0 : i32
    %c0_i32_0 = arith.constant 0 : i32
    %c0_i32_1 = arith.constant 0 : i32
    return %c0_i32, %c0_i32_0 : i32, i32
  }
  func.func @transform_2(%arg0: i32, %arg1: i32) -> (i32, i32) {
    %c0_i32 = arith.constant 0 : i32
    %c0_i32_0 = arith.constant 0 : i32
    %c0_i32_1 = arith.constant 0 : i32
    return %c0_i32, %c0_i32_0 : i32, i32
  }
  func.func @transform_3(%arg0: i32, %arg1: i32) -> (i32, i32) {
    %c0_i32 = arith.constant 0 : i32
    %c0_i32_0 = arith.constant 0 : i32
    %c0_i32_1 = arith.constant 0 : i32
    return %c0_i32, %c0_i32_0 : i32, i32
  }
  func.func @transform_4(%arg0: i32, %arg1: i32) -> (i32, i32, i32) {
    %c0_i32 = arith.constant 0 : i32
    %c0_i32_0 = arith.constant 0 : i32
    return %arg0, %arg1, %c0_i32 : i32, i32, i32
  }
}

</mosaic_0001>

<llo_original>
// kernel: tpu_custom_call.1
$region0: #{tpu_custom_call.1}
  #allocation0 [shape = 'u32[]', space=smem, size = 0x4, offset = 0x4, fixed_abs, tag = 'smem constant byte address 0x4 - core index']
  #allocation1 [shape = 'u32[72,128]{1,0:T(1,128)}', space=vmem, size = 0x9000, scoped, tag = 'internal scratch']
  %s0 = inlined_call_operand.hbm [shape: f32[2,256,128], index: 0, kind: input, shape index: {}]
  %s1 = inlined_call_operand.hbm [shape: f32[128,128], index: 1, kind: input, shape index: {}]
  %s2 = inlined_call_operand.vmem [shape: f32[1,128], index: 2, kind: input, shape index: {}]
  %s3 = inlined_call_operand.vmem [shape: f32[1,128], index: 3, kind: input, shape index: {}]
  %s4 = inlined_call_operand.hbm [shape: f32[2,256,128], index: 4, kind: output, shape index: {}]
  %s5 = sld [smem:[#allocation0]]
  $region57: #{tpu_custom_call.1} parent=0
    _
  %s7 = ssub.s32 1, %s5
  %s8 = scalar_select 0, %s7, %s5
  $region1: #{tpu_custom_call.1} parent=0
    #allocation2 [shape = 'u8[262144]{0}', space=vmem, size = 0x40000, scoped, tag = 'input window, operand 0']
    #allocation3 [shape = 's32[2]{0}', space=sflag, size = 0x8, scoped, tag = 'scoped memory for tpu_custom_call.1']
    #allocation4 [shape = 's32[2]{0}', space=sflag, size = 0x8, scoped, tag = 'scoped memory for tpu_custom_call.1']
    #allocation5 [shape = 'u8[65536]{0}', space=vmem, size = 0x10000, scoped, tag = 'input window, operand 1, single buffered']
    #allocation6 [shape = 's32[1]{0}', space=sflag, size = 0x4, scoped, tag = 'scoped memory for tpu_custom_call.1']
    #allocation7 [shape = 'u8[262144]{0}', space=vmem, size = 0x40000, scoped, tag = 'output window, operand 0']
    %9 = vsyncpa [#allocation3], 0
    %s10 = scalar_lea.sflag [#allocation3], 1
    %11 = vsyncpa %s10, 0
    %12 = vsyncpa [#allocation6], 0
    %13 = vsyncpa [#allocation4], 0
    %s14 = scalar_lea.sflag [#allocation4], 1
    %15 = vsyncpa %s14, 0
    loop: start=0, step=1, limit=4
    $region2: #{tpu_custom_call.1} parent=1 // loop_pre_header
      _
    $region3: #{tpu_custom_call.1} parent=1 // loop_header
      %s17 = sphi 0, %s21
      %p18 = scmp.ge.s32.totalorder %s17, 4
      %s24 = sphi 0, %s36
      %s25 = sphi 0, %s32
      %s26 = sphi 0, %s24
      %s27 = sphi 0, %s25
      %s28 = sphi 0, %s26
      %s29 = sphi 0, %s27
      %s41 = sphi 0, %s43
      %s44 = sphi 0, %s41
      %s45 = sphi 0, %s44
      %s61 = sphi 0, %s45
      %s65 = sphi 0, %s65
      %s67 = sphi 0, %s65
      %s68 = sphi 0, %s67
      %s82 = sphi 0, %s68
      %s86 = sphi 0, %s86
      %s88 = sphi 0, %s86
      %s89 = sphi 0, %s88
      %s103 = sphi 0, %s89
      %s107 = sphi 0, %s107
      %s109 = sphi 0, %s107
      %s110 = sphi 0, %s109
      %s124 = sphi 0, %s110
      %s132 = sphi 0, %s134
      %s135 = sphi 0, %s132
      %s136 = sphi 0, %s135
      %s152 = sphi 0, %s136
    $region4: #{tpu_custom_call.1} parent=1 // loop_header_branch
      %20 = sbr.rel (%p18) target = $region8
    $region5: #{tpu_custom_call.1} parent=1 // loop_body
      %s22 = ssub.s32 %s17, 1
      %s23 = ssub.s32 %s17, 2
      %s30 = sadd.s32 1, %s25
      %p31 = scmp.ge.s32.totalorder %s30, 1
      %s32 = scalar_select %p31, 0, %s30
      %s33 = sadd.s32 1, %s24
      %s34 = scalar_select %p31, %s33, %s24
      %p35 = scmp.ge.s32.totalorder %s34, 2
      %s36 = scalar_select %p35, 0, %s34
      %s37 = ssub.s32 %s24, %s36
      %s38 = ssub.s32 %s25, %s32
      %s39 = sor.u32 %s37, %s38
      %p40 = scmp.eq.s32.totalorder %s39, 0
      %s42 = sadd.s32 %s41, 1
      %s43 = scalar_select %p40, %s41, %s42
      %p46 = pneg %p40
      %p47 = scmp.eq.s32.totalorder %s17, 1
      %p48 = por %p46, %p47
      %p49 = scmp.ne.s32.totalorder %s41, %s44
      %p50 = scmp.eq.s32.totalorder %s17, 0
      %p51 = por %p49, %p50
      %p52 = scmp.ne.s32.totalorder %s41, %s44
      %p53 = scmp.eq.s32.totalorder %s22, 1
      %p54 = por %p52, %p53
      %p55 = scmp.ne.s32.totalorder %s44, %s45
      %p56 = scmp.eq.s32.totalorder %s22, 0
      %p57 = por %p55, %p56
      %p58 = scmp.ne.s32.totalorder %s44, %s45
      %p59 = scmp.eq.s32.totalorder %s23, 1
      %p60 = por %p58, %p59
      %p62 = scmp.ne.s32.totalorder %s45, %s61
      %p63 = scmp.eq.s32.totalorder %s23, 0
      %p64 = por %p62, %p63
      %s66 = sadd.s32 %s65, 1
      %p69 = scmp.eq.s32.totalorder %s17, 1
      %p70 = scmp.ne.s32.totalorder %s65, %s67
      %p71 = scmp.eq.s32.totalorder %s17, 0
      %p72 = por %p70, %p71
      %p73 = scmp.ne.s32.totalorder %s65, %s67
      %p74 = scmp.eq.s32.totalorder %s22, 1
      %p75 = por %p73, %p74
      %p76 = scmp.ne.s32.totalorder %s67, %s68
      %p77 = scmp.eq.s32.totalorder %s22, 0
      %p78 = por %p76, %p77
      %p79 = scmp.ne.s32.totalorder %s67, %s68
      %p80 = scmp.eq.s32.totalorder %s23, 1
      %p81 = por %p79, %p80
      %p83 = scmp.ne.s32.totalorder %s68, %s82
      %p84 = scmp.eq.s32.totalorder %s23, 0
      %p85 = por %p83, %p84
      %s87 = sadd.s32 %s86, 1
      %p90 = scmp.eq.s32.totalorder %s17, 1
      %p91 = scmp.ne.s32.totalorder %s86, %s88
      %p92 = scmp.eq.s32.totalorder %s17, 0
      %p93 = por %p91, %p92
      %p94 = scmp.ne.s32.totalorder %s86, %s88
      %p95 = scmp.eq.s32.totalorder %s22, 1
      %p96 = por %p94, %p95
      %p97 = scmp.ne.s32.totalorder %s88, %s89
      %p98 = scmp.eq.s32.totalorder %s22, 0
      %p99 = por %p97, %p98
      %p100 = scmp.ne.s32.totalorder %s88, %s89
      %p101 = scmp.eq.s32.totalorder %s23, 1
      %p102 = por %p100, %p101
      %p104 = scmp.ne.s32.totalorder %s89, %s103
      %p105 = scmp.eq.s32.totalorder %s23, 0
      %p106 = por %p104, %p105
      %s108 = sadd.s32 %s107, 1
      %p111 = scmp.eq.s32.totalorder %s17, 1
      %p112 = scmp.ne.s32.totalorder %s107, %s109
      %p113 = scmp.eq.s32.totalorder %s17, 0
      %p114 = por %p112, %p113
      %p115 = scmp.ne.s32.totalorder %s107, %s109
      %p116 = scmp.eq.s32.totalorder %s22, 1
      %p117 = por %p115, %p116
      %p118 = scmp.ne.s32.totalorder %s109, %s110
      %p119 = scmp.eq.s32.totalorder %s22, 0
      %p120 = por %p118, %p119
      %p121 = scmp.ne.s32.totalorder %s109, %s110
      %p122 = scmp.eq.s32.totalorder %s23, 1
      %p123 = por %p121, %p122
      %p125 = scmp.ne.s32.totalorder %s110, %s124
      %p126 = scmp.eq.s32.totalorder %s23, 0
      %p127 = por %p125, %p126
      %s128 = ssub.s32 %s24, %s36
      %s129 = ssub.s32 %s25, %s32
      %s130 = sor.u32 %s128, %s129
      %p131 = scmp.eq.s32.totalorder %s130, 0
      %s133 = sadd.s32 %s132, 1
      %s134 = scalar_select %p131, %s132, %s133
      %p137 = pneg %p131
      %p138 = scmp.eq.s32.totalorder %s17, 1
      %p139 = por %p137, %p138
      %p140 = scmp.ne.s32.totalorder %s132, %s135
      %p141 = scmp.eq.s32.totalorder %s17, 0
      %p142 = por %p140, %p141
      %p143 = scmp.ne.s32.totalorder %s132, %s135
      %p144 = scmp.eq.s32.totalorder %s22, 1
      %p145 = por %p143, %p144
      %p146 = scmp.ne.s32.totalorder %s135, %s136
      %p147 = scmp.eq.s32.totalorder %s22, 0
      %p148 = por %p146, %p147
      %p149 = scmp.ne.s32.totalorder %s135, %s136
      %p150 = scmp.eq.s32.totalorder %s23, 1
      %p151 = por %p149, %p150
      %p153 = scmp.ne.s32.totalorder %s136, %s152
      %p154 = scmp.eq.s32.totalorder %s23, 0
      %p155 = por %p153, %p154
      %p156 = scmp.le.s32.totalorder 1, %s17
      %p157 = scmp.lt.s32.totalorder %s17, 3
      %p158 = pnand %p156, %p157
      %p159 = pneg %p158
      // Predicated region
      $region9: #{tpu_custom_call.1} parent=5 // pred_check
        _
      $region10: #{tpu_custom_call.1} parent=5 // pred_check_branch
        %161 = sbr.rel (%p158) target = $region12
      $region11: #{tpu_custom_call.1} parent=5 // pred_region
        %s162 = ssub.s32 %s17, 1
        // Predicated region
        $region13: #{tpu_custom_call.1} parent=11 // pred_check
          %p163 = pneg %p78
        $region14: #{tpu_custom_call.1} parent=11 // pred_check_branch
          %165 = sbr.rel (%p163) target = $region16
        $region15: #{tpu_custom_call.1} parent=11 // pred_region
          %167 = vsyncadd [#allocation6], 0
          %s168 = sshll.u32 %s1, 4
          %s169 = int_to_ptr.hbm [resolvable:$true] %s168
          %s170 = sshll.u32 [#allocation5], 4
          %s171 = int_to_ptr.vmem [resolvable:$true] %s170
          %176 = dma.hbm_to_vmem [thread:$0]  %s169, 2048, %s171, [#allocation6], 128, 128, 8
        $region16: #{tpu_custom_call.1} parent=11 // pred_fallthru
          _
        // Predicated region
        $region17: #{tpu_custom_call.1} parent=11 // pred_check
          %p177 = pneg %p99
        $region18: #{tpu_custom_call.1} parent=11 // pred_check_branch
          %179 = sbr.rel (%p177) target = $region20
        $region19: #{tpu_custom_call.1} parent=11 // pred_region
          _
        $region20: #{tpu_custom_call.1} parent=11 // pred_fallthru
          _
        // Predicated region
        $region21: #{tpu_custom_call.1} parent=11 // pred_check
          %p180 = pneg %p120
        $region22: #{tpu_custom_call.1} parent=11 // pred_check_branch
          %182 = sbr.rel (%p180) target = $region24
        $region23: #{tpu_custom_call.1} parent=11 // pred_region
          _
        $region24: #{tpu_custom_call.1} parent=11 // pred_fallthru
          _
      $region12: #{tpu_custom_call.1} parent=5 // pred_fallthru
        _
      %p183 = scmp.lt.s32.totalorder %s17, 2
      // Predicated region
      $region25: #{tpu_custom_call.1} parent=5 // pred_check
        %p184 = pneg %p183
      $region26: #{tpu_custom_call.1} parent=5 // pred_check_branch
        %186 = sbr.rel (%p184) target = $region28
      $region27: #{tpu_custom_call.1} parent=5 // pred_region
        // Predicated region
        $region29: #{tpu_custom_call.1} parent=27 // pred_check
          %p187 = pneg %p51
        $region30: #{tpu_custom_call.1} parent=27 // pred_check_branch
          %189 = sbr.rel (%p187) target = $region32
        $region31: #{tpu_custom_call.1} parent=27 // pred_region
          %s190 = sand.u32 %s41, 1
          %s191 = scalar_lea.sflag [#allocation3], %s190
          %s192 = sand.u32 %s41, 1
          %s193 = smul.addr %s192, 256
          %s194 = scalar_lea.vmem [#allocation2], %s193
          %s195 = smul.u32 32, %s25
          %197 = vsyncadd %s191, 0
          %s198 = smul.addr %s24, 32
          %s199 = sadd.s32 %s195, %s198
          %s200 = smul.addr %s199, 8
          %s201 = scalar_lea.hbm %s0, %s200
          %s202 = sshll.u32 %s201, 4
          %s203 = int_to_ptr.hbm [resolvable:$true] %s202
          %s204 = sshll.u32 %s194, 4
          %s205 = int_to_ptr.vmem [resolvable:$true] %s204
          %210 = dma.hbm_to_vmem [thread:$0]  %s203, 4096, %s205, %s191, 128, 128, 8
        $region32: #{tpu_custom_call.1} parent=27 // pred_fallthru
          _
      $region28: #{tpu_custom_call.1} parent=5 // pred_fallthru
        _
      %p211 = scmp.le.s32.totalorder 1, %s17
      %p212 = scmp.lt.s32.totalorder %s17, 3
      %p213 = pnand %p211, %p212
      %p214 = pneg %p213
      // Predicated region
      $region33: #{tpu_custom_call.1} parent=5 // pred_check
        _
      $region34: #{tpu_custom_call.1} parent=5 // pred_check_branch
        %216 = sbr.rel (%p213) target = $region36
      $region35: #{tpu_custom_call.1} parent=5 // pred_region
        %s217 = ssub.s32 %s17, 1
        %s218 = sand.u32 %s44, 1
        %s219 = scalar_lea.sflag [#allocation3], %s218
        %s220 = sand.u32 %s44, 1
        %s221 = smul.addr %s220, 256
        %s222 = scalar_lea.vmem [#allocation2], %s221
        // Predicated region
        $region37: #{tpu_custom_call.1} parent=35 // pred_check
          %p223 = pneg %p57
        $region38: #{tpu_custom_call.1} parent=35 // pred_check_branch
          %225 = sbr.rel (%p223) target = $region40
        $region39: #{tpu_custom_call.1} parent=35 // pred_region
          %227 = dma.done %s219, 4096
        $region40: #{tpu_custom_call.1} parent=35 // pred_fallthru
          _
        // Predicated region
        $region41: #{tpu_custom_call.1} parent=35 // pred_check
          %p228 = pneg %p78
        $region42: #{tpu_custom_call.1} parent=35 // pred_check_branch
          %230 = sbr.rel (%p228) target = $region44
        $region43: #{tpu_custom_call.1} parent=35 // pred_region
          %232 = dma.done [#allocation6], 2048
        $region44: #{tpu_custom_call.1} parent=35 // pred_fallthru
          _
        %s233 = sand.u32 %s44, 1
        %s234 = scalar_lea.sflag [#allocation3], %s233
        %s235 = sand.u32 %s44, 1
        %s236 = smul.addr %s235, 256
        %s237 = scalar_lea.vmem [#allocation2], %s236
        %p238 = pneg %p57
        %p239 = pneg %p54
        %p240 = pneg %p78
        %p241 = pneg %p75
        %p242 = pneg %p99
        %p243 = pneg %p96
        %p244 = pneg %p120
        %p245 = pneg %p117
        %p246 = pneg %p148
        %p247 = pneg %p145
        %s248 = sand.u32 %s135, 1
        %s249 = scalar_lea.sflag [#allocation4], %s248
        %s250 = sand.u32 %s135, 1
        %s251 = smul.addr %s250, 256
        %s252 = scalar_lea.vmem [#allocation7], %s251
        %s253 = smul.u32 32, %s27
        %s254 = smul.u32 32, %s27
        %v255 = vld [vmem:[%s222] sm:$0xff]
        %v256 = vld [vmem:[%s222 + $0x8] sm:$0xff]
        %v257 = vld [vmem:[%s222 + $0x10] sm:$0xff]
        %v258 = vld [vmem:[%s222 + $0x18] sm:$0xff]
        %v259 = vld [vmem:[%s222 + $0x20] sm:$0xff]
        %v260 = vld [vmem:[%s222 + $0x28] sm:$0xff]
        %v261 = vld [vmem:[%s222 + $0x30] sm:$0xff]
        %v262 = vld [vmem:[%s222 + $0x38] sm:$0xff]
        %v263 = vld [vmem:[%s222 + $0x40] sm:$0xff]
        %v264 = vld [vmem:[%s222 + $0x48] sm:$0xff]
        %v265 = vld [vmem:[%s222 + $0x50] sm:$0xff]
        %v266 = vld [vmem:[%s222 + $0x58] sm:$0xff]
        %v267 = vld [vmem:[%s222 + $0x60] sm:$0xff]
        %v268 = vld [vmem:[%s222 + $0x68] sm:$0xff]
        %v269 = vld [vmem:[%s222 + $0x70] sm:$0xff]
        %v270 = vld [vmem:[%s222 + $0x78] sm:$0xff]
        %v271 = vld [vmem:[%s222 + $0x80] sm:$0xff]
        %v272 = vld [vmem:[%s222 + $0x88] sm:$0xff]
        %v273 = vld [vmem:[%s222 + $0x90] sm:$0xff]
        %v274 = vld [vmem:[%s222 + $0x98] sm:$0xff]
        %v275 = vld [vmem:[%s222 + $0xa0] sm:$0xff]
        %v276 = vld [vmem:[%s222 + $0xa8] sm:$0xff]
        %v277 = vld [vmem:[%s222 + $0xb0] sm:$0xff]
        %v278 = vld [vmem:[%s222 + $0xb8] sm:$0xff]
        %v279 = vld [vmem:[%s222 + $0xc0] sm:$0xff]
        %v280 = vld [vmem:[%s222 + $0xc8] sm:$0xff]
        %v281 = vld [vmem:[%s222 + $0xd0] sm:$0xff]
        %v282 = vld [vmem:[%s222 + $0xd8] sm:$0xff]
        %v283 = vld [vmem:[%s222 + $0xe0] sm:$0xff]
        %v284 = vld [vmem:[%s222 + $0xe8] sm:$0xff]
        %v285 = vld [vmem:[%s222 + $0xf0] sm:$0xff]
        %v286 = vld [vmem:[%s222 + $0xf8] sm:$0xff]
        %v287 = vld [vmem:[#allocation5] sm:$0xff]
        %v288 = vld [vmem:[#allocation5 + $0x8] sm:$0xff]
        %v289 = vld [vmem:[#allocation5 + $0x10] sm:$0xff]
        %v290 = vld [vmem:[#allocation5 + $0x18] sm:$0xff]
        %v291 = vld [vmem:[#allocation5 + $0x20] sm:$0xff]
        %v292 = vld [vmem:[#allocation5 + $0x28] sm:$0xff]
        %v293 = vld [vmem:[#allocation5 + $0x30] sm:$0xff]
        %v294 = vld [vmem:[#allocation5 + $0x38] sm:$0xff]
        %v295 = vld [vmem:[#allocation5 + $0x40] sm:$0xff]
        %v296 = vld [vmem:[#allocation5 + $0x48] sm:$0xff]
        %v297 = vld [vmem:[#allocation5 + $0x50] sm:$0xff]
        %v298 = vld [vmem:[#allocation5 + $0x58] sm:$0xff]
        %v299 = vld [vmem:[#allocation5 + $0x60] sm:$0xff]
        %v300 = vld [vmem:[#allocation5 + $0x68] sm:$0xff]
        %v301 = vld [vmem:[#allocation5 + $0x70] sm:$0xff]
        %v302 = vld [vmem:[#allocation5 + $0x78] sm:$0xff]
        %303 = vmatpush.msra.mxu0 %v302
        %304 = vmatpush.msra.mxu0 %v301
        %305 = vmatpush.msra.mxu0 %v300
        %306 = vmatpush.msra.mxu0 %v299
        %307 = vmatpush.msra.mxu0 %v298
        %308 = vmatpush.msra.mxu0 %v297
        %309 = vmatpush.msra.mxu0 %v296
        %310 = vmatpush.msra.mxu0 %v295
        %311 = vmatpush.msra.mxu0 %v294
        %312 = vmatpush.msra.mxu0 %v293
        %313 = vmatpush.msra.mxu0 %v292
        %314 = vmatpush.msra.mxu0 %v291
        %315 = vmatpush.msra.mxu0 %v290
        %316 = vmatpush.msra.mxu0 %v289
        %317 = vmatpush.msra.mxu0 %v288
        %318 = vmatpush.msra.mxu0 %v287
        %319 = vmatmul.f32.gmra.mxu0 %v255
        %v320 = vpop.f32.mrf.mxu0
        %v321 = vadd.f32 0.0, %v320
        %322 = vmatmul.f32.gmra.mxu0 %v256
        %v323 = vpop.f32.mrf.mxu0
        %v324 = vadd.f32 0.0, %v323
        %325 = vmatmul.f32.gmra.mxu0 %v257
        %v326 = vpop.f32.mrf.mxu0
        %v327 = vadd.f32 0.0, %v326
        %328 = vmatmul.f32.gmra.mxu0 %v258
        %v329 = vpop.f32.mrf.mxu0
        %v330 = vadd.f32 0.0, %v329
        %331 = vmatmul.f32.gmra.mxu0 %v259
        %v332 = vpop.f32.mrf.mxu0
        %v333 = vadd.f32 0.0, %v332
        %334 = vmatmul.f32.gmra.mxu0 %v260
        %v335 = vpop.f32.mrf.mxu0
        %v336 = vadd.f32 0.0, %v335
        %337 = vmatmul.f32.gmra.mxu0 %v261
        %v338 = vpop.f32.mrf.mxu0
        %v339 = vadd.f32 0.0, %v338
        %340 = vmatmul.f32.gmra.mxu0 %v262
        %v341 = vpop.f32.mrf.mxu0
        %v342 = vadd.f32 0.0, %v341
        %343 = vmatmul.f32.gmra.mxu0 %v263
        %v344 = vpop.f32.mrf.mxu0
        %v345 = vadd.f32 0.0, %v344
        %346 = vmatmul.f32.gmra.mxu0 %v264
        %v347 = vpop.f32.mrf.mxu0
        %v348 = vadd.f32 0.0, %v347
        %349 = vmatmul.f32.gmra.mxu0 %v265
        %v350 = vpop.f32.mrf.mxu0
        %v351 = vadd.f32 0.0, %v350
        %352 = vmatmul.f32.gmra.mxu0 %v266
        %v353 = vpop.f32.mrf.mxu0
        %v354 = vadd.f32 0.0, %v353
        %355 = vmatmul.f32.gmra.mxu0 %v267
        %v356 = vpop.f32.mrf.mxu0
        %v357 = vadd.f32 0.0, %v356
        %358 = vmatmul.f32.gmra.mxu0 %v268
        %v359 = vpop.f32.mrf.mxu0
        %v360 = vadd.f32 0.0, %v359
        %361 = vmatmul.f32.gmra.mxu0 %v269
        %v362 = vpop.f32.mrf.mxu0
        %v363 = vadd.f32 0.0, %v362
        %364 = vmatmul.f32.gmra.mxu0 %v270
        %v365 = vpop.f32.mrf.mxu0
        %v366 = vadd.f32 0.0, %v365
        %367 = vmatmul.f32.gmra.mxu0 %v271
        %v368 = vpop.f32.mrf.mxu0
        %v369 = vadd.f32 0.0, %v368
        %370 = vmatmul.f32.gmra.mxu0 %v272
        %v371 = vpop.f32.mrf.mxu0
        %v372 = vadd.f32 0.0, %v371
        %373 = vmatmul.f32.gmra.mxu0 %v273
        %v374 = vpop.f32.mrf.mxu0
        %v375 = vadd.f32 0.0, %v374
        %376 = vmatmul.f32.gmra.mxu0 %v274
        %v377 = vpop.f32.mrf.mxu0
        %v378 = vadd.f32 0.0, %v377
        %379 = vmatmul.f32.gmra.mxu0 %v275
        %v380 = vpop.f32.mrf.mxu0
        %v381 = vadd.f32 0.0, %v380
        %382 = vmatmul.f32.gmra.mxu0 %v276
        %v383 = vpop.f32.mrf.mxu0
        %v384 = vadd.f32 0.0, %v383
        %385 = vmatmul.f32.gmra.mxu0 %v277
        %v386 = vpop.f32.mrf.mxu0
        %v387 = vadd.f32 0.0, %v386
        %388 = vmatmul.f32.gmra.mxu0 %v278
        %v389 = vpop.f32.mrf.mxu0
        %v390 = vadd.f32 0.0, %v389
        %391 = vmatmul.f32.gmra.mxu0 %v279
        %v392 = vpop.f32.mrf.mxu0
        %v393 = vadd.f32 0.0, %v392
        %394 = vmatmul.f32.gmra.mxu0 %v280
        %v395 = vpop.f32.mrf.mxu0
        %v396 = vadd.f32 0.0, %v395
        %397 = vmatmul.f32.gmra.mxu0 %v281
        %v398 = vpop.f32.mrf.mxu0
        %v399 = vadd.f32 0.0, %v398
        %400 = vmatmul.f32.gmra.mxu0 %v282
        %v401 = vpop.f32.mrf.mxu0
        %v402 = vadd.f32 0.0, %v401
        %403 = vmatmul.f32.gmra.mxu0 %v283
        %v404 = vpop.f32.mrf.mxu0
        %v405 = vadd.f32 0.0, %v404
        %406 = vmatmul.f32.gmra.mxu0 %v284
        %v407 = vpop.f32.mrf.mxu0
        %v408 = vadd.f32 0.0, %v407
        %409 = vmatmul.f32.gmra.mxu0 %v285
        %v410 = vpop.f32.mrf.mxu0
        %v411 = vadd.f32 0.0, %v410
        %412 = vmatmul.f32.gmra.mxu0 %v286
        %v413 = vpop.f32.mrf.mxu0
        %v414 = vadd.f32 0.0, %v413
        %415 = vdwg.mxu0
        %v416 = vld [vmem:[%s2] sm:$0x1]
        %v418 = vperm.slane %v416, 0
        %v420 = vmul.f32 %v321, %v418
        %v421 = vmul.f32 %v324, %v418
        %v422 = vmul.f32 %v327, %v418
        %v423 = vmul.f32 %v330, %v418
        %v424 = vmul.f32 %v333, %v418
        %v425 = vmul.f32 %v336, %v418
        %v426 = vmul.f32 %v339, %v418
        %v427 = vmul.f32 %v342, %v418
        %v428 = vmul.f32 %v345, %v418
        %v429 = vmul.f32 %v348, %v418
        %v430 = vmul.f32 %v351, %v418
        %v431 = vmul.f32 %v354, %v418
        %v432 = vmul.f32 %v357, %v418
        %v433 = vmul.f32 %v360, %v418
        %v434 = vmul.f32 %v363, %v418
        %v435 = vmul.f32 %v366, %v418
        %v436 = vmul.f32 %v369, %v418
        %v437 = vmul.f32 %v372, %v418
        %v438 = vmul.f32 %v375, %v418
        %v439 = vmul.f32 %v378, %v418
        %v440 = vmul.f32 %v381, %v418
        %v441 = vmul.f32 %v384, %v418
        %v442 = vmul.f32 %v387, %v418
        %v443 = vmul.f32 %v390, %v418
        %v444 = vmul.f32 %v393, %v418
        %v445 = vmul.f32 %v396, %v418
        %v446 = vmul.f32 %v399, %v418
        %v447 = vmul.f32 %v402, %v418
        %v448 = vmul.f32 %v405, %v418
        %v449 = vmul.f32 %v408, %v418
        %v450 = vmul.f32 %v411, %v418
        %v451 = vmul.f32 %v414, %v418
        %v452 = vld [vmem:[%s3] sm:$0x1]
        %v454 = vperm.slane %v452, 0
        %v456 = vadd.f32 %v420, %v454
        %v457 = vadd.f32 %v421, %v454
        %v458 = vadd.f32 %v422, %v454
        %v459 = vadd.f32 %v423, %v454
        %v460 = vadd.f32 %v424, %v454
        %v461 = vadd.f32 %v425, %v454
        %v462 = vadd.f32 %v426, %v454
        %v463 = vadd.f32 %v427, %v454
        %v464 = vadd.f32 %v428, %v454
        %v465 = vadd.f32 %v429, %v454
        %v466 = vadd.f32 %v430, %v454
        %v467 = vadd.f32 %v431, %v454
        %v468 = vadd.f32 %v432, %v454
        %v469 = vadd.f32 %v433, %v454
        %v470 = vadd.f32 %v434, %v454
        %v471 = vadd.f32 %v435, %v454
        %v472 = vadd.f32 %v436, %v454
        %v473 = vadd.f32 %v437, %v454
        %v474 = vadd.f32 %v438, %v454
        %v475 = vadd.f32 %v439, %v454
        %v476 = vadd.f32 %v440, %v454
        %v477 = vadd.f32 %v441, %v454
        %v478 = vadd.f32 %v442, %v454
        %v479 = vadd.f32 %v443, %v454
        %v480 = vadd.f32 %v444, %v454
        %v481 = vadd.f32 %v445, %v454
        %v482 = vadd.f32 %v446, %v454
        %v483 = vadd.f32 %v447, %v454
        %v484 = vadd.f32 %v448, %v454
        %v485 = vadd.f32 %v449, %v454
        %v486 = vadd.f32 %v450, %v454
        %v487 = vadd.f32 %v451, %v454
        %v488 = vmax.f32 %v456, 0.0
        %v489 = vmax.f32 %v457, 0.0
        %v490 = vmax.f32 %v458, 0.0
        %v491 = vmax.f32 %v459, 0.0
        %v492 = vmax.f32 %v460, 0.0
        %v493 = vmax.f32 %v461, 0.0
        %v494 = vmax.f32 %v462, 0.0
        %v495 = vmax.f32 %v463, 0.0
        %v496 = vmax.f32 %v464, 0.0
        %v497 = vmax.f32 %v465, 0.0
        %v498 = vmax.f32 %v466, 0.0
        %v499 = vmax.f32 %v467, 0.0
        %v500 = vmax.f32 %v468, 0.0
        %v501 = vmax.f32 %v469, 0.0
        %v502 = vmax.f32 %v470, 0.0
        %v503 = vmax.f32 %v471, 0.0
        %v504 = vmax.f32 %v472, 0.0
        %v505 = vmax.f32 %v473, 0.0
        %v506 = vmax.f32 %v474, 0.0
        %v507 = vmax.f32 %v475, 0.0
        %v508 = vmax.f32 %v476, 0.0
        %v509 = vmax.f32 %v477, 0.0
        %v510 = vmax.f32 %v478, 0.0
        %v511 = vmax.f32 %v479, 0.0
        %v512 = vmax.f32 %v480, 0.0
        %v513 = vmax.f32 %v481, 0.0
        %v514 = vmax.f32 %v482, 0.0
        %v515 = vmax.f32 %v483, 0.0
        %v516 = vmax.f32 %v484, 0.0
        %v517 = vmax.f32 %v485, 0.0
        %v518 = vmax.f32 %v486, 0.0
        %v519 = vmax.f32 %v487, 0.0
        %520 = vst [vmem:[%s252] sm:$0xff] %v488
        %521 = vst [vmem:[%s252 + $0x8] sm:$0xff] %v489
        %522 = vst [vmem:[%s252 + $0x10] sm:$0xff] %v490
        %523 = vst [vmem:[%s252 + $0x18] sm:$0xff] %v491
        %524 = vst [vmem:[%s252 + $0x20] sm:$0xff] %v492
        %525 = vst [vmem:[%s252 + $0x28] sm:$0xff] %v493
        %526 = vst [vmem:[%s252 + $0x30] sm:$0xff] %v494
        %527 = vst [vmem:[%s252 + $0x38] sm:$0xff] %v495
        %528 = vst [vmem:[%s252 + $0x40] sm:$0xff] %v496
        %529 = vst [vmem:[%s252 + $0x48] sm:$0xff] %v497
        %530 = vst [vmem:[%s252 + $0x50] sm:$0xff] %v498
        %531 = vst [vmem:[%s252 + $0x58] sm:$0xff] %v499
        %532 = vst [vmem:[%s252 + $0x60] sm:$0xff] %v500
        %533 = vst [vmem:[%s252 + $0x68] sm:$0xff] %v501
        %534 = vst [vmem:[%s252 + $0x70] sm:$0xff] %v502
        %535 = vst [vmem:[%s252 + $0x78] sm:$0xff] %v503
        %536 = vst [vmem:[%s252 + $0x80] sm:$0xff] %v504
        %537 = vst [vmem:[%s252 + $0x88] sm:$0xff] %v505
        %538 = vst [vmem:[%s252 + $0x90] sm:$0xff] %v506
        %539 = vst [vmem:[%s252 + $0x98] sm:$0xff] %v507
        %540 = vst [vmem:[%s252 + $0xa0] sm:$0xff] %v508
        %541 = vst [vmem:[%s252 + $0xa8] sm:$0xff] %v509
        %542 = vst [vmem:[%s252 + $0xb0] sm:$0xff] %v510
        %543 = vst [vmem:[%s252 + $0xb8] sm:$0xff] %v511
        %544 = vst [vmem:[%s252 + $0xc0] sm:$0xff] %v512
        %545 = vst [vmem:[%s252 + $0xc8] sm:$0xff] %v513
        %546 = vst [vmem:[%s252 + $0xd0] sm:$0xff] %v514
        %547 = vst [vmem:[%s252 + $0xd8] sm:$0xff] %v515
        %548 = vst [vmem:[%s252 + $0xe0] sm:$0xff] %v516
        %549 = vst [vmem:[%s252 + $0xe8] sm:$0xff] %v517
        %550 = vst [vmem:[%s252 + $0xf0] sm:$0xff] %v518
        %551 = vst [vmem:[%s252 + $0xf8] sm:$0xff] %v519
        %s552 = sand.u32 %s135, 1
        %s553 = scalar_lea.sflag [#allocation4], %s552
        %s554 = sand.u32 %s135, 1
        %s555 = smul.addr %s554, 256
        %s556 = scalar_lea.vmem [#allocation7], %s555
        // Predicated region
        $region45: #{tpu_custom_call.1} parent=35 // pred_check
          %p557 = pneg %p145
        $region46: #{tpu_custom_call.1} parent=35 // pred_check_branch
          %559 = sbr.rel (%p557) target = $region48
        $region47: #{tpu_custom_call.1} parent=35 // pred_region
          %s560 = smul.u32 32, %s27
          %562 = vsyncadd %s553, 0
          %s563 = smul.addr %s26, 32
          %s564 = sadd.s32 %s560, %s563
          %s565 = smul.addr %s564, 8
          %s566 = scalar_lea.hbm %s4, %s565
          %s567 = sshll.u32 %s556, 4
          %s568 = int_to_ptr.vmem [resolvable:$true] %s567
          %s569 = sshll.u32 %s566, 4
          %s570 = int_to_ptr.hbm [resolvable:$true] %s569
          %575 = dma.vmem_to_hbm [thread:$0]  %s568, 4096, %s570, %s553, 128, 128, 8
        $region48: #{tpu_custom_call.1} parent=35 // pred_fallthru
          _
      $region36: #{tpu_custom_call.1} parent=5 // pred_fallthru
        _
      %p576 = scmp.le.s32.totalorder 2, %s17
      // Predicated region
      $region49: #{tpu_custom_call.1} parent=5 // pred_check
        %p577 = pneg %p576
      $region50: #{tpu_custom_call.1} parent=5 // pred_check_branch
        %579 = sbr.rel (%p577) target = $region52
      $region51: #{tpu_custom_call.1} parent=5 // pred_region
        %s580 = ssub.s32 %s17, 2
        // Predicated region
        $region53: #{tpu_custom_call.1} parent=51 // pred_check
          %p581 = pneg %p151
        $region54: #{tpu_custom_call.1} parent=51 // pred_check_branch
          %583 = sbr.rel (%p581) target = $region56
        $region55: #{tpu_custom_call.1} parent=51 // pred_region
          %s584 = sand.u32 %s136, 1
          %s585 = scalar_lea.sflag [#allocation4], %s584
          %s586 = sand.u32 %s136, 1
          %s587 = smul.addr %s586, 256
          %s588 = scalar_lea.vmem [#allocation7], %s587
          %590 = dma.done %s585, 4096
        $region56: #{tpu_custom_call.1} parent=51 // pred_fallthru
          _
      $region52: #{tpu_custom_call.1} parent=5 // pred_fallthru
        _
    $region6: #{tpu_custom_call.1} parent=1 // loop_footer
      %s21 = sadd.s32 1, %s17
    $region7: #{tpu_custom_call.1} parent=1 // loop_footer_branch
      %16 = sbr.rel target = $region3
    $region8: #{tpu_custom_call.1} parent=1 // loop_exit
      _
    %591 = vsyncpa [#allocation3], 1
    %s592 = scalar_lea.sflag [#allocation3], 1
    %593 = vsyncpa %s592, 1
    %594 = vsyncpa [#allocation6], 1
    %595 = vsyncpa [#allocation4], 1
    %s596 = scalar_lea.sflag [#allocation4], 1
    %597 = vsyncpa %s596, 1

</llo_original>
